<compile_context>
chip_gen: v7x
topology: tpu7x:2x2x1
jax: 0.10.0
libtpu: 0.0.40
codegen_flags: <defaults>
</compile_context>

<pallas_src>
import functools
import math

import jax
import jax.numpy as jnp
from jax.experimental import pallas as pl
from jax.experimental.pallas import tpu as pltpu


_DEFAULT_BLOCK_BUDGET = 2 * 1024 * 1024  # bytes per input block (pre double-buffer)
_VMEM_LIMIT_BYTES = 32 * 1024 * 1024     # safe on v5e / v6e / v7x


def _sublane_multiple(dtype):
    itemsize = jnp.dtype(dtype).itemsize
    return {4: 8, 2: 16, 1: 32}.get(itemsize, 8)


def _pick_tiles(shape, dtype, perm, kept, budget_bytes):
    """Choose a tile size for every kept input dim.

    Tiles respect the block-tiling rule on BOTH sides: a dim that is the lane
    (last) dim of either the input or output block must be a multiple of 128
    or full; a second-minor dim must be a multiple of the dtype sublane pack
    (8/16/32) or full.  Dims are split (loosest alignment first) until the
    block fits the byte budget.
    """
    n = len(shape)
    itemsize = jnp.dtype(dtype).itemsize
    sub = _sublane_multiple(dtype)
    inv = {d: q for q, d in enumerate(perm)}  # input dim -> output position

    def gran(d):
        g = 1
        for pos in (d, inv[d]):
            if pos == n - 1:
                g = max(g, 128)
            elif pos == n - 2:
                g = max(g, sub)
        return g

    tile = {d: shape[d] for d in kept}

    def block_bytes():
        total = itemsize
        for d in kept:
            total *= max(1, tile[d])
        return total

    for d in sorted(kept, key=lambda d: (gran(d), -shape[d])):
        if block_bytes() <= budget_bytes:
            break
        g = gran(d)
        dim = shape[d]
        if dim <= g or dim % g != 0:
            continue  # cannot split cleanly; full extent is always legal
        other = block_bytes() // max(1, tile[d])
        best = None
        t = g
        while t <= dim:
            if dim % t == 0 and t * other <= budget_bytes:
                best = t
            t += g
        tile[d] = best if best is not None else g
    return tile


def _permute_kernel(x_ref, o_ref, *, kperm):
    x = x_ref[...]
    if kperm == tuple(range(len(kperm))):
        # Lane/sublane layout already matches: all reordering was done by the
        # DMA index_maps; the body is a pure copy (DMA-roofline bound).
        o_ref[...] = x
    else:
        # Small transpose of only the block-resident dims (XLU / sublane work).
        o_ref[...] = jnp.transpose(x, kperm)


def pallas_permute(x, perm, *, block_budget_bytes=_DEFAULT_BLOCK_BUDGET):
    """Equivalent of torch.Tensor.permute(perm) implemented with pallas_call."""
    perm = tuple(int(p) for p in perm)
    n = x.ndim
    assert sorted(perm) == list(range(n)), "perm must be a permutation of dims"
    if n < 2:
        return x  # 0-D / 1-D permute is the identity

    out_shape = tuple(x.shape[p] for p in perm)
    a, b = perm[-2], perm[-1]            # input dims landing in output's last two
    kept = sorted({a, b, n - 2, n - 1})  # block-resident input dims

    tile = _pick_tiles(x.shape, x.dtype, perm, kept, block_budget_bytes)

    # Grid axes, in output-dimension order (outputs written contiguously).
    # Each axis records (input_dim, output_pos, num_blocks).
    axes = []
    for q in range(n):
        d = perm[q]
        if d not in kept:
            axes.append((d, q, x.shape[d]))
        elif tile[d] < x.shape[d]:
            axes.append((d, q, x.shape[d] // tile[d]))
    grid = tuple(nb for _, _, nb in axes)

    # Block shapes: kept dims get their tile, grid dims are squeezed (None).
    in_block = tuple(tile[d] if d in kept else None for d in range(n))
    out_block = tuple(tile[perm[q]] if perm[q] in kept else None for q in range(n))

    def in_index_map(*gids):
        idx = [0] * n
        for g, (d, _, _) in zip(gids, axes):
            idx[d] = g
        return tuple(idx)

    def out_index_map(*gids):
        idx = [0] * n
        for g, (_, q, _) in zip(gids, axes):
            idx[q] = g
        return tuple(idx)

    # In-kernel permutation restricted to the kept dims.
    kin = kept                                              # input order
    kout = [perm[q] for q in range(n) if perm[q] in kept]   # output order
    kperm = tuple(kin.index(d) for d in kout)

    cp_kwargs = dict(vmem_limit_bytes=_VMEM_LIMIT_BYTES)
    if grid:
        cp_kwargs["dimension_semantics"] = ("parallel",) * len(grid)

    nbytes = x.size * jnp.dtype(x.dtype).itemsize
    return pl.pallas_call(
        functools.partial(_permute_kernel, kperm=kperm),
        out_shape=jax.ShapeDtypeStruct(out_shape, x.dtype),
        grid=grid,
        in_specs=[pl.BlockSpec(in_block, in_index_map)],
        out_specs=pl.BlockSpec(out_block, out_index_map),
        compiler_params=pltpu.CompilerParams(**cp_kwargs),
        cost_estimate=pl.CostEstimate(
            flops=0, transcendentals=0, bytes_accessed=2 * nbytes
        ),
    )(x)


if __name__ == "__main__":
    key = jax.random.PRNGKey(0)
    # Small NCHW input, consistent with the module's typical use.
    x = jax.random.normal(key, (2, 4, 16, 16), dtype=jnp.float32)

    # 1) NCHW -> NHWC: lane dim moves -> in-kernel 2D/3D transpose of kept dims.
    perm = (0, 2, 3, 1)
    out = jax.block_until_ready(pallas_permute(x, perm))
    ref = jnp.transpose(x, perm)
    assert out.shape == ref.shape and out.dtype == ref.dtype
    assert jnp.array_equal(out, ref), "permute (0,2,3,1) mismatch"

    # 2) Swap batch/channel and H/W: grid handles (N,C), kernel transposes (H,W).
    perm2 = (1, 0, 3, 2)
    out2 = jax.block_until_ready(pallas_permute(x, perm2))
    assert jnp.array_equal(out2, jnp.transpose(x, perm2)), "permute (1,0,3,2) mismatch"

    # 3) Lane dim fixed: all reordering via index_maps, kernel body is a pure copy.
    perm3 = (1, 0, 2, 3)
    out3 = jax.block_until_ready(pallas_permute(x, perm3))
    assert jnp.array_equal(out3, jnp.transpose(x, perm3)), "permute (1,0,2,3) mismatch"

    # 4) Force the tiled path (tiny block budget) to exercise multi-axis grids.
    out4 = jax.block_until_ready(pallas_permute(x, perm, block_budget_bytes=2048))
    assert jnp.array_equal(out4, ref), "tiled permute (0,2,3,1) mismatch"

    print("KERNEL_OK")
</pallas_src>

<mosaic_0001>
module attributes {stable_mosaic.version = 11 : i64} {
  func.func @_permute_kernel(%arg0: i32, %arg1: memref<1x4x16x16xf32, #tpu.memory_space<vmem>>, %arg2: memref<1x16x16x4xf32, #tpu.memory_space<vmem>>) attributes {dimension_semantics = [#tpu.dimension_semantics<parallel>], iteration_bounds = array<i64: 2>, scalar_prefetch = 0 : i64, scratch_operands = 0 : i64, tpu.core_type = #tpu.core_type<tc>, window_params = [{transform_indices = @transform_0, window_bounds = array<i64: 1, 4, 16, 16>}, {transform_indices = @transform_1, window_bounds = array<i64: 1, 16, 16, 4>}]} {
    %c0 = arith.constant 0 : index
    %c0_0 = arith.constant 0 : index
    %c0_1 = arith.constant 0 : index
    %c0_2 = arith.constant 0 : index
    %0 = vector.load %arg1[%c0, %c0_0, %c0_1, %c0_2] : memref<1x4x16x16xf32, #tpu.memory_space<vmem>>, vector<1x4x16x16xf32>
    %1 = vector.shape_cast %0 : vector<1x4x16x16xf32> to vector<4x16x16xf32>
    %2 = tpu.transpose %1, [1, 2, 0] : vector<4x16x16xf32> -> vector<16x16x4xf32>
    %c0_3 = arith.constant 0 : index
    %c0_4 = arith.constant 0 : index
    %c0_5 = arith.constant 0 : index
    %c0_6 = arith.constant 0 : index
    %3 = vector.load %arg2[%c0_3, %c0_4, %c0_5, %c0_6] : memref<1x16x16x4xf32, #tpu.memory_space<vmem>>, vector<1x16x16x4xf32>
    %4 = vector.shape_cast %3 : vector<1x16x16x4xf32> to vector<16x16x4xf32>
    %5 = vector.shape_cast %2 : vector<16x16x4xf32> to vector<1x16x16x4xf32>
    tpu.vector_store %arg2[%c0_3, %c0_4, %c0_5, %c0_6], %5 {strides = array<i32>} : memref<1x16x16x4xf32, #tpu.memory_space<vmem>>, vector<1x16x16x4xf32>,
    return
  }
  func.func @transform_0(%arg0: i32) -> (i32, i32, i32, i32) {
    %c0_i32 = arith.constant 0 : i32
    %c0_i32_0 = arith.constant 0 : i32
    %c0_i32_1 = arith.constant 0 : i32
    %c0_i32_2 = arith.constant 0 : i32
    return %arg0, %c0_i32, %c0_i32_0, %c0_i32_1 : i32, i32, i32, i32
  }
  func.func @transform_1(%arg0: i32) -> (i32, i32, i32, i32) {
    %c0_i32 = arith.constant 0 : i32
    %c0_i32_0 = arith.constant 0 : i32
    %c0_i32_1 = arith.constant 0 : i32
    %c0_i32_2 = arith.constant 0 : i32
    return %arg0, %c0_i32, %c0_i32_0, %c0_i32_1 : i32, i32, i32, i32
  }
}

</mosaic_0001>

<llo_original>
// kernel: tpu_custom_call.1
$region0: #{tpu_custom_call.1}
  #allocation0 [shape = 'u32[]', space=smem, size = 0x4, offset = 0x4, fixed_abs, tag = 'smem constant byte address 0x4 - core index']
  #allocation1 [shape = 'u32[144,128]{1,0:T(1,128)}', space=vmem, size = 0x12000, scoped, tag = 'internal scratch']
  %s0 = inlined_call_operand.hbm [shape: f32[2,4,16,16], index: 0, kind: input, shape index: {}]
  %s1 = inlined_call_operand.vmem [shape: f32[2,16,16,4], index: 1, kind: output, shape index: {}]
  %s2 = sld [smem:[#allocation0]]
  $region41: #{tpu_custom_call.1} parent=0
    _
  %s4 = ssub.s32 1, %s2
  %s5 = scalar_select 0, %s4, %s2
  $region1: #{tpu_custom_call.1} parent=0
    #allocation2 [shape = 'u8[65536]{0}', space=vmem, size = 0x10000, scoped, tag = 'input window, operand 0']
    #allocation3 [shape = 's32[2]{0}', space=sflag, size = 0x8, scoped, tag = 'scoped memory for tpu_custom_call.1']
    %6 = vsyncpa [#allocation3], 0
    %s7 = scalar_lea.sflag [#allocation3], 1
    %8 = vsyncpa %s7, 0
    loop: start=0, step=1, limit=4
    $region2: #{tpu_custom_call.1} parent=1 // loop_pre_header
      _
    $region3: #{tpu_custom_call.1} parent=1 // loop_header
      %s10 = sphi 0, %s14
      %p11 = scmp.ge.s32.totalorder %s10, 4
      %s20 = sphi 0, %s22
      %s23 = sphi 0, %s20
      %s24 = sphi 0, %s23
      %s40 = sphi 0, %s24
      %s46 = sphi 0, %s48
      %s49 = sphi 0, %s46
      %s50 = sphi 0, %s49
      %s66 = sphi 0, %s50
    $region4: #{tpu_custom_call.1} parent=1 // loop_header_branch
      %13 = sbr.rel (%p11) target = $region8
    $region5: #{tpu_custom_call.1} parent=1 // loop_body
      %s15 = ssub.s32 %s10, 1
      %s16 = ssub.s32 %s10, 2
      %s17 = sadd.s32 %s10, 1
      %s18 = ssub.s32 %s10, %s17
      %p19 = scmp.eq.s32.totalorder %s18, 0
      %s21 = sadd.s32 %s20, 1
      %s22 = scalar_select %p19, %s20, %s21
      %p25 = pneg %p19
      %p26 = scmp.eq.s32.totalorder %s10, 1
      %p27 = por %p25, %p26
      %p28 = scmp.ne.s32.totalorder %s20, %s23
      %p29 = scmp.eq.s32.totalorder %s10, 0
      %p30 = por %p28, %p29
      %p31 = scmp.ne.s32.totalorder %s20, %s23
      %p32 = scmp.eq.s32.totalorder %s15, 1
      %p33 = por %p31, %p32
      %p34 = scmp.ne.s32.totalorder %s23, %s24
      %p35 = scmp.eq.s32.totalorder %s15, 0
      %p36 = por %p34, %p35
      %p37 = scmp.ne.s32.totalorder %s23, %s24
      %p38 = scmp.eq.s32.totalorder %s16, 1
      %p39 = por %p37, %p38
      %p41 = scmp.ne.s32.totalorder %s24, %s40
      %p42 = scmp.eq.s32.totalorder %s16, 0
      %p43 = por %p41, %p42
      %s44 = ssub.s32 %s10, %s17
      %p45 = scmp.eq.s32.totalorder %s44, 0
      %s47 = sadd.s32 %s46, 1
      %s48 = scalar_select %p45, %s46, %s47
      %p51 = pneg %p45
      %p52 = scmp.eq.s32.totalorder %s10, 1
      %p53 = por %p51, %p52
      %p54 = scmp.ne.s32.totalorder %s46, %s49
      %p55 = scmp.eq.s32.totalorder %s10, 0
      %p56 = por %p54, %p55
      %p57 = scmp.ne.s32.totalorder %s46, %s49
      %p58 = scmp.eq.s32.totalorder %s15, 1
      %p59 = por %p57, %p58
      %p60 = scmp.ne.s32.totalorder %s49, %s50
      %p61 = scmp.eq.s32.totalorder %s15, 0
      %p62 = por %p60, %p61
      %p63 = scmp.ne.s32.totalorder %s49, %s50
      %p64 = scmp.eq.s32.totalorder %s16, 1
      %p65 = por %p63, %p64
      %p67 = scmp.ne.s32.totalorder %s50, %s66
      %p68 = scmp.eq.s32.totalorder %s16, 0
      %p69 = por %p67, %p68
      %p70 = scmp.le.s32.totalorder 1, %s10
      %p71 = scmp.lt.s32.totalorder %s10, 3
      %p72 = pnand %p70, %p71
      %p73 = pneg %p72
      // Predicated region
      $region9: #{tpu_custom_call.1} parent=5 // pred_check
        _
      $region10: #{tpu_custom_call.1} parent=5 // pred_check_branch
        %75 = sbr.rel (%p72) target = $region12
      $region11: #{tpu_custom_call.1} parent=5 // pred_region
        %s76 = ssub.s32 %s10, 1
      $region12: #{tpu_custom_call.1} parent=5 // pred_fallthru
        _
      %p77 = scmp.lt.s32.totalorder %s10, 2
      // Predicated region
      $region13: #{tpu_custom_call.1} parent=5 // pred_check
        %p78 = pneg %p77
      $region14: #{tpu_custom_call.1} parent=5 // pred_check_branch
        %80 = sbr.rel (%p78) target = $region16
      $region15: #{tpu_custom_call.1} parent=5 // pred_region
        // Predicated region
        $region17: #{tpu_custom_call.1} parent=15 // pred_check
          %p81 = pneg %p30
        $region18: #{tpu_custom_call.1} parent=15 // pred_check_branch
          %83 = sbr.rel (%p81) target = $region20
        $region19: #{tpu_custom_call.1} parent=15 // pred_region
          %s84 = sand.u32 %s20, 1
          %s85 = scalar_lea.sflag [#allocation3], %s84
          %s86 = sand.u32 %s20, 1
          %s87 = smul.addr %s86, 64
          %s88 = scalar_lea.vmem [#allocation2], %s87
          %s90 = ssub.s32 1024, 1024
          %91 = vsyncadd %s85, %s90
          %s92 = smul.addr %s10, 8
          %s93 = smul.addr %s92, 128
          %s94 = scalar_lea.hbm %s0, %s93
          %s95 = sshll.u32 %s88, 4
          %s96 = int_to_ptr.vmem [resolvable:$true] %s95
          %101 = dma.hbm_to_vmem [thread:$0]  %s94, 1024, %s96, %s85, 128, 128, 8
        $region20: #{tpu_custom_call.1} parent=15 // pred_fallthru
          _
      $region16: #{tpu_custom_call.1} parent=5 // pred_fallthru
        _
      %p102 = scmp.le.s32.totalorder 1, %s10
      %p103 = scmp.lt.s32.totalorder %s10, 3
      %p104 = pnand %p102, %p103
      %p105 = pneg %p104
      // Predicated region
      $region21: #{tpu_custom_call.1} parent=5 // pred_check
        _
      $region22: #{tpu_custom_call.1} parent=5 // pred_check_branch
        %107 = sbr.rel (%p104) target = $region24
      $region23: #{tpu_custom_call.1} parent=5 // pred_region
        %s108 = ssub.s32 %s10, 1
        %s109 = sand.u32 %s23, 1
        %s110 = scalar_lea.sflag [#allocation3], %s109
        %s111 = sand.u32 %s23, 1
        %s112 = smul.addr %s111, 64
        %s113 = scalar_lea.vmem [#allocation2], %s112
        // Predicated region
        $region25: #{tpu_custom_call.1} parent=23 // pred_check
          %p114 = pneg %p36
        $region26: #{tpu_custom_call.1} parent=23 // pred_check_branch
          %116 = sbr.rel (%p114) target = $region28
        $region27: #{tpu_custom_call.1} parent=23 // pred_region
          %117 = dma.done %s110, 1024
        $region28: #{tpu_custom_call.1} parent=23 // pred_fallthru
          _
        %s118 = sand.u32 %s23, 1
        %s119 = scalar_lea.sflag [#allocation3], %s118
        %s120 = sand.u32 %s23, 1
        %s121 = smul.addr %s120, 64
        %s122 = scalar_lea.vmem [#allocation2], %s121
        %p123 = pneg %p36
        %p124 = pneg %p33
        %p125 = pneg %p62
        %p126 = pneg %p59
        %p127 = scmp.lt.s32.totalorder %s15, 1
        %s128 = scalar_select %p127, %s15, 1
        %s129 = smul.addr %s128, 32
        %s130 = smul.addr %s129, 8
        %s131 = scalar_lea.vmem %s1, %s130
        %p132 = scmp.lt.s32.totalorder %s15, 1
        %s133 = scalar_select %p132, %s15, 1
        %s134 = smul.addr %s133, 32
        %s135 = smul.addr %s134, 8
        %s136 = scalar_lea.vmem %s1, %s135
        %v137 = vld [vmem:[%s113] sm:$0xff]
        %v138 = vld [vmem:[%s113 + $0x8] sm:$0xff]
        %v139 = vld [vmem:[%s113 + $0x10] sm:$0xff]
        %v140 = vld [vmem:[%s113 + $0x18] sm:$0xff]
        %v141 = vld [vmem:[%s113 + $0x20] sm:$0xff]
        %v142 = vld [vmem:[%s113 + $0x28] sm:$0xff]
        %v143 = vld [vmem:[%s113 + $0x30] sm:$0xff]
        %v144 = vld [vmem:[%s113 + $0x38] sm:$0xff]
        %145 = vxpose.xlu0.b32.start [1/16] %v137, 128
        %146 = vxpose.xlu0.b32.cont [2/16] %v138, 128
        %147 = vxpose.xlu0.b32.cont [3/16] 0.0, 128
        %148 = vxpose.xlu0.b32.cont [4/16] 0.0, 128
        %149 = vxpose.xlu0.b32.cont [5/16] 0.0, 128
        %150 = vxpose.xlu0.b32.cont [6/16] 0.0, 128
        %151 = vxpose.xlu0.b32.cont [7/16] 0.0, 128
        %152 = vxpose.xlu0.b32.cont [8/16] 0.0, 128
        %153 = vxpose.xlu0.b32.cont [9/16] 0.0, 128
        %154 = vxpose.xlu0.b32.cont [10/16] 0.0, 128
        %155 = vxpose.xlu0.b32.cont [11/16] 0.0, 128
        %156 = vxpose.xlu0.b32.cont [12/16] 0.0, 128
        %157 = vxpose.xlu0.b32.cont [13/16] 0.0, 128
        %158 = vxpose.xlu0.b32.cont [14/16] 0.0, 128
        %159 = vxpose.xlu0.b32.cont [15/16] 0.0, 128
        %160 = vxpose.xlu0.b32.end [16/16] 0.0, 128
        %v161 = vpop.trf.xlu0
        %v162 = vpop.trf.xlu0
        %v163 = vpop.trf.xlu0
        %v164 = vpop.trf.xlu0
        %v165 = vpop.trf.xlu0
        %v166 = vpop.trf.xlu0
        %v167 = vpop.trf.xlu0
        %v168 = vpop.trf.xlu0
        %v169 = vpop.trf.xlu0
        %v170 = vpop.trf.xlu0
        %v171 = vpop.trf.xlu0
        %v172 = vpop.trf.xlu0
        %v173 = vpop.trf.xlu0
        %v174 = vpop.trf.xlu0
        %v175 = vpop.trf.xlu0
        %v176 = vpop.trf.xlu0
        %177 = vxpose.xlu0.b32.start [1/16] %v139, 128
        %178 = vxpose.xlu0.b32.cont [2/16] %v140, 128
        %179 = vxpose.xlu0.b32.cont [3/16] 0.0, 128
        %180 = vxpose.xlu0.b32.cont [4/16] 0.0, 128
        %181 = vxpose.xlu0.b32.cont [5/16] 0.0, 128
        %182 = vxpose.xlu0.b32.cont [6/16] 0.0, 128
        %183 = vxpose.xlu0.b32.cont [7/16] 0.0, 128
        %184 = vxpose.xlu0.b32.cont [8/16] 0.0, 128
        %185 = vxpose.xlu0.b32.cont [9/16] 0.0, 128
        %186 = vxpose.xlu0.b32.cont [10/16] 0.0, 128
        %187 = vxpose.xlu0.b32.cont [11/16] 0.0, 128
        %188 = vxpose.xlu0.b32.cont [12/16] 0.0, 128
        %189 = vxpose.xlu0.b32.cont [13/16] 0.0, 128
        %190 = vxpose.xlu0.b32.cont [14/16] 0.0, 128
        %191 = vxpose.xlu0.b32.cont [15/16] 0.0, 128
        %192 = vxpose.xlu0.b32.end [16/16] 0.0, 128
        %v193 = vpop.trf.xlu0
        %v194 = vpop.trf.xlu0
        %v195 = vpop.trf.xlu0
        %v196 = vpop.trf.xlu0
        %v197 = vpop.trf.xlu0
        %v198 = vpop.trf.xlu0
        %v199 = vpop.trf.xlu0
        %v200 = vpop.trf.xlu0
        %v201 = vpop.trf.xlu0
        %v202 = vpop.trf.xlu0
        %v203 = vpop.trf.xlu0
        %v204 = vpop.trf.xlu0
        %v205 = vpop.trf.xlu0
        %v206 = vpop.trf.xlu0
        %v207 = vpop.trf.xlu0
        %v208 = vpop.trf.xlu0
        %209 = vxpose.xlu0.b32.start [1/16] %v141, 128
        %210 = vxpose.xlu0.b32.cont [2/16] %v142, 128
        %211 = vxpose.xlu0.b32.cont [3/16] 0.0, 128
        %212 = vxpose.xlu0.b32.cont [4/16] 0.0, 128
        %213 = vxpose.xlu0.b32.cont [5/16] 0.0, 128
        %214 = vxpose.xlu0.b32.cont [6/16] 0.0, 128
        %215 = vxpose.xlu0.b32.cont [7/16] 0.0, 128
        %216 = vxpose.xlu0.b32.cont [8/16] 0.0, 128
        %217 = vxpose.xlu0.b32.cont [9/16] 0.0, 128
        %218 = vxpose.xlu0.b32.cont [10/16] 0.0, 128
        %219 = vxpose.xlu0.b32.cont [11/16] 0.0, 128
        %220 = vxpose.xlu0.b32.cont [12/16] 0.0, 128
        %221 = vxpose.xlu0.b32.cont [13/16] 0.0, 128
        %222 = vxpose.xlu0.b32.cont [14/16] 0.0, 128
        %223 = vxpose.xlu0.b32.cont [15/16] 0.0, 128
        %224 = vxpose.xlu0.b32.end [16/16] 0.0, 128
        %v225 = vpop.trf.xlu0
        %v226 = vpop.trf.xlu0
        %v227 = vpop.trf.xlu0
        %v228 = vpop.trf.xlu0
        %v229 = vpop.trf.xlu0
        %v230 = vpop.trf.xlu0
        %v231 = vpop.trf.xlu0
        %v232 = vpop.trf.xlu0
        %v233 = vpop.trf.xlu0
        %v234 = vpop.trf.xlu0
        %v235 = vpop.trf.xlu0
        %v236 = vpop.trf.xlu0
        %v237 = vpop.trf.xlu0
        %v238 = vpop.trf.xlu0
        %v239 = vpop.trf.xlu0
        %v240 = vpop.trf.xlu0
        %241 = vxpose.xlu0.b32.start [1/16] %v143, 128
        %242 = vxpose.xlu0.b32.cont [2/16] %v144, 128
        %243 = vxpose.xlu0.b32.cont [3/16] 0.0, 128
        %244 = vxpose.xlu0.b32.cont [4/16] 0.0, 128
        %245 = vxpose.xlu0.b32.cont [5/16] 0.0, 128
        %246 = vxpose.xlu0.b32.cont [6/16] 0.0, 128
        %247 = vxpose.xlu0.b32.cont [7/16] 0.0, 128
        %248 = vxpose.xlu0.b32.cont [8/16] 0.0, 128
        %249 = vxpose.xlu0.b32.cont [9/16] 0.0, 128
        %250 = vxpose.xlu0.b32.cont [10/16] 0.0, 128
        %251 = vxpose.xlu0.b32.cont [11/16] 0.0, 128
        %252 = vxpose.xlu0.b32.cont [12/16] 0.0, 128
        %253 = vxpose.xlu0.b32.cont [13/16] 0.0, 128
        %254 = vxpose.xlu0.b32.cont [14/16] 0.0, 128
        %255 = vxpose.xlu0.b32.cont [15/16] 0.0, 128
        %256 = vxpose.xlu0.b32.end [16/16] 0.0, 128
        %v257 = vpop.trf.xlu0
        %v258 = vpop.trf.xlu0
        %v259 = vpop.trf.xlu0
        %v260 = vpop.trf.xlu0
        %v261 = vpop.trf.xlu0
        %v262 = vpop.trf.xlu0
        %v263 = vpop.trf.xlu0
        %v264 = vpop.trf.xlu0
        %v265 = vpop.trf.xlu0
        %v266 = vpop.trf.xlu0
        %v267 = vpop.trf.xlu0
        %v268 = vpop.trf.xlu0
        %v269 = vpop.trf.xlu0
        %v270 = vpop.trf.xlu0
        %v271 = vpop.trf.xlu0
        %v272 = vpop.trf.xlu0
        %v273 = vcombine.low %v161, %v225
        %v274 = vcombine.high %v161, %v225
        %v276 = vunpack.c.l.s4 1983009808
        %v277 = vunpack.c.0.s8 %v276
        %v278 = vlaneseq
        %v279 = vshrl.u32 %v278, 7
        %v280 = vsub.s32 %v277, %v279
        %v281 = vrot.slane %v273, %v280
        %v283 = vunpack.c.l.s4 1983009808
        %v284 = vunpack.c.0.s8 %v283
        %v285 = vlaneseq
        %v286 = vshrl.u32 %v285, 7
        %v287 = vsub.s32 %v284, %v286
        %v288 = vrot.slane %v274, %v287
        %v289 = vcombine.low %v193, %v257
        %v290 = vcombine.high %v193, %v257
        %v292 = vunpack.c.l.s4 1983009808
        %v293 = vunpack.c.0.s8 %v292
        %v294 = vlaneseq
        %v295 = vshrl.u32 %v294, 7
        %v296 = vsub.s32 %v293, %v295
        %v297 = vrot.slane %v289, %v296
        %v299 = vunpack.c.l.s4 1983009808
        %v300 = vunpack.c.0.s8 %v299
        %v301 = vlaneseq
        %v302 = vshrl.u32 %v301, 7
        %v303 = vsub.s32 %v300, %v302
        %v304 = vrot.slane %v290, %v303
        %v305 = vcombine.low %v281, %v297
        %v306 = vcombine.high %v281, %v297
        %v308 = vunpack.c.l.s4 1934713408
        %v309 = vunpack.c.0.s8 %v308
        %v310 = vlaneseq
        %v311 = vshrl.u32 %v310, 7
        %v312 = vsub.s32 %v309, %v311
        %v313 = vrot.slane %v305, %v312
        %v315 = vunpack.c.l.s4 1934713408
        %v316 = vunpack.c.0.s8 %v315
        %v317 = vlaneseq
        %v318 = vshrl.u32 %v317, 7
        %v319 = vsub.s32 %v316, %v318
        %v320 = vrot.slane %v306, %v319
        %v321 = vcombine.low %v288, %v304
        %v322 = vcombine.high %v288, %v304
        %v324 = vunpack.c.l.s4 1934713408
        %v325 = vunpack.c.0.s8 %v324
        %v326 = vlaneseq
        %v327 = vshrl.u32 %v326, 7
        %v328 = vsub.s32 %v325, %v327
        %v329 = vrot.slane %v321, %v328
        %v331 = vunpack.c.l.s4 1934713408
        %v332 = vunpack.c.0.s8 %v331
        %v333 = vlaneseq
        %v334 = vshrl.u32 %v333, 7
        %v335 = vsub.s32 %v332, %v334
        %v336 = vrot.slane %v322, %v335
        %v337 = vcombine.high %v313, 0.0
        %v338 = vcombine.high %v320, 0.0
        %v339 = vcombine.high %v329, 0.0
        %v340 = vcombine.high %v336, 0.0
        %v341 = vcombine.low %v162, %v226
        %v342 = vcombine.high %v162, %v226
        %v344 = vunpack.c.l.s4 1983009808
        %v345 = vunpack.c.0.s8 %v344
        %v346 = vlaneseq
        %v347 = vshrl.u32 %v346, 7
        %v348 = vsub.s32 %v345, %v347
        %v349 = vrot.slane %v341, %v348
        %v351 = vunpack.c.l.s4 1983009808
        %v352 = vunpack.c.0.s8 %v351
        %v353 = vlaneseq
        %v354 = vshrl.u32 %v353, 7
        %v355 = vsub.s32 %v352, %v354
        %v356 = vrot.slane %v342, %v355
        %v357 = vcombine.low %v194, %v258
        %v358 = vcombine.high %v194, %v258
        %v360 = vunpack.c.l.s4 1983009808
        %v361 = vunpack.c.0.s8 %v360
        %v362 = vlaneseq
        %v363 = vshrl.u32 %v362, 7
        %v364 = vsub.s32 %v361, %v363
        %v365 = vrot.slane %v357, %v364
        %v367 = vunpack.c.l.s4 1983009808
        %v368 = vunpack.c.0.s8 %v367
        %v369 = vlaneseq
        %v370 = vshrl.u32 %v369, 7
        %v371 = vsub.s32 %v368, %v370
        %v372 = vrot.slane %v358, %v371
        %v373 = vcombine.low %v349, %v365
        %v374 = vcombine.high %v349, %v365
        %v376 = vunpack.c.l.s4 1934713408
        %v377 = vunpack.c.0.s8 %v376
        %v378 = vlaneseq
        %v379 = vshrl.u32 %v378, 7
        %v380 = vsub.s32 %v377, %v379
        %v381 = vrot.slane %v373, %v380
        %v383 = vunpack.c.l.s4 1934713408
        %v384 = vunpack.c.0.s8 %v383
        %v385 = vlaneseq
        %v386 = vshrl.u32 %v385, 7
        %v387 = vsub.s32 %v384, %v386
        %v388 = vrot.slane %v374, %v387
        %v389 = vcombine.low %v356, %v372
        %v390 = vcombine.high %v356, %v372
        %v392 = vunpack.c.l.s4 1934713408
        %v393 = vunpack.c.0.s8 %v392
        %v394 = vlaneseq
        %v395 = vshrl.u32 %v394, 7
        %v396 = vsub.s32 %v393, %v395
        %v397 = vrot.slane %v389, %v396
        %v399 = vunpack.c.l.s4 1934713408
        %v400 = vunpack.c.0.s8 %v399
        %v401 = vlaneseq
        %v402 = vshrl.u32 %v401, 7
        %v403 = vsub.s32 %v400, %v402
        %v404 = vrot.slane %v390, %v403
        %v405 = vcombine.high %v381, 0.0
        %v406 = vcombine.high %v388, 0.0
        %v407 = vcombine.high %v397, 0.0
        %v408 = vcombine.high %v404, 0.0
        %409 = vxpose.xlu0.b32.start [1/16] %v313, 128
        %410 = vxpose.xlu0.b32.cont [2/16] 0.0, 128
        %411 = vxpose.xlu0.b32.cont [3/16] 0.0, 128
        %412 = vxpose.xlu0.b32.cont [4/16] 0.0, 128
        %413 = vxpose.xlu0.b32.cont [5/16] 0.0, 128
        %414 = vxpose.xlu0.b32.cont [6/16] 0.0, 128
        %415 = vxpose.xlu0.b32.cont [7/16] 0.0, 128
        %416 = vxpose.xlu0.b32.cont [8/16] 0.0, 128
        %417 = vxpose.xlu0.b32.cont [9/16] 0.0, 128
        %418 = vxpose.xlu0.b32.cont [10/16] 0.0, 128
        %419 = vxpose.xlu0.b32.cont [11/16] 0.0, 128
        %420 = vxpose.xlu0.b32.cont [12/16] 0.0, 128
        %421 = vxpose.xlu0.b32.cont [13/16] 0.0, 128
        %422 = vxpose.xlu0.b32.cont [14/16] 0.0, 128
        %423 = vxpose.xlu0.b32.cont [15/16] 0.0, 128
        %424 = vxpose.xlu0.b32.end [16/16] 0.0, 128
        %v425 = vpop.trf.xlu0
        %v426 = vpop.trf.xlu0
        %v427 = vpop.trf.xlu0
        %v428 = vpop.trf.xlu0
        %v429 = vpop.trf.xlu0
        %v430 = vpop.trf.xlu0
        %v431 = vpop.trf.xlu0
        %v432 = vpop.trf.xlu0
        %v433 = vpop.trf.xlu0
        %v434 = vpop.trf.xlu0
        %v435 = vpop.trf.xlu0
        %v436 = vpop.trf.xlu0
        %v437 = vpop.trf.xlu0
        %v438 = vpop.trf.xlu0
        %v439 = vpop.trf.xlu0
        %v440 = vpop.trf.xlu0
        %441 = vxpose.xlu0.b32.start [1/16] %v337, 128
        %442 = vxpose.xlu0.b32.cont [2/16] 0.0, 128
        %443 = vxpose.xlu0.b32.cont [3/16] 0.0, 128
        %444 = vxpose.xlu0.b32.cont [4/16] 0.0, 128
        %445 = vxpose.xlu0.b32.cont [5/16] 0.0, 128
        %446 = vxpose.xlu0.b32.cont [6/16] 0.0, 128
        %447 = vxpose.xlu0.b32.cont [7/16] 0.0, 128
        %448 = vxpose.xlu0.b32.cont [8/16] 0.0, 128
        %449 = vxpose.xlu0.b32.cont [9/16] 0.0, 128
        %450 = vxpose.xlu0.b32.cont [10/16] 0.0, 128
        %451 = vxpose.xlu0.b32.cont [11/16] 0.0, 128
        %452 = vxpose.xlu0.b32.cont [12/16] 0.0, 128
        %453 = vxpose.xlu0.b32.cont [13/16] 0.0, 128
        %454 = vxpose.xlu0.b32.cont [14/16] 0.0, 128
        %455 = vxpose.xlu0.b32.cont [15/16] 0.0, 128
        %456 = vxpose.xlu0.b32.end [16/16] 0.0, 128
        %v457 = vpop.trf.xlu0
        %v458 = vpop.trf.xlu0
        %v459 = vpop.trf.xlu0
        %v460 = vpop.trf.xlu0
        %v461 = vpop.trf.xlu0
        %v462 = vpop.trf.xlu0
        %v463 = vpop.trf.xlu0
        %v464 = vpop.trf.xlu0
        %v465 = vpop.trf.xlu0
        %v466 = vpop.trf.xlu0
        %v467 = vpop.trf.xlu0
        %v468 = vpop.trf.xlu0
        %v469 = vpop.trf.xlu0
        %v470 = vpop.trf.xlu0
        %v471 = vpop.trf.xlu0
        %v472 = vpop.trf.xlu0
        %473 = vxpose.xlu0.b32.start [1/16] %v320, 128
        %474 = vxpose.xlu0.b32.cont [2/16] 0.0, 128
        %475 = vxpose.xlu0.b32.cont [3/16] 0.0, 128
        %476 = vxpose.xlu0.b32.cont [4/16] 0.0, 128
        %477 = vxpose.xlu0.b32.cont [5/16] 0.0, 128
        %478 = vxpose.xlu0.b32.cont [6/16] 0.0, 128
        %479 = vxpose.xlu0.b32.cont [7/16] 0.0, 128
        %480 = vxpose.xlu0.b32.cont [8/16] 0.0, 128
        %481 = vxpose.xlu0.b32.cont [9/16] 0.0, 128
        %482 = vxpose.xlu0.b32.cont [10/16] 0.0, 128
        %483 = vxpose.xlu0.b32.cont [11/16] 0.0, 128
        %484 = vxpose.xlu0.b32.cont [12/16] 0.0, 128
        %485 = vxpose.xlu0.b32.cont [13/16] 0.0, 128
        %486 = vxpose.xlu0.b32.cont [14/16] 0.0, 128
        %487 = vxpose.xlu0.b32.cont [15/16] 0.0, 128
        %488 = vxpose.xlu0.b32.end [16/16] 0.0, 128
        %v489 = vpop.trf.xlu0
        %v490 = vpop.trf.xlu0
        %v491 = vpop.trf.xlu0
        %v492 = vpop.trf.xlu0
        %v493 = vpop.trf.xlu0
        %v494 = vpop.trf.xlu0
        %v495 = vpop.trf.xlu0
        %v496 = vpop.trf.xlu0
        %v497 = vpop.trf.xlu0
        %v498 = vpop.trf.xlu0
        %v499 = vpop.trf.xlu0
        %v500 = vpop.trf.xlu0
        %v501 = vpop.trf.xlu0
        %v502 = vpop.trf.xlu0
        %v503 = vpop.trf.xlu0
        %v504 = vpop.trf.xlu0
        %505 = vxpose.xlu0.b32.start [1/16] %v338, 128
        %506 = vxpose.xlu0.b32.cont [2/16] 0.0, 128
        %507 = vxpose.xlu0.b32.cont [3/16] 0.0, 128
        %508 = vxpose.xlu0.b32.cont [4/16] 0.0, 128
        %509 = vxpose.xlu0.b32.cont [5/16] 0.0, 128
        %510 = vxpose.xlu0.b32.cont [6/16] 0.0, 128
        %511 = vxpose.xlu0.b32.cont [7/16] 0.0, 128
        %512 = vxpose.xlu0.b32.cont [8/16] 0.0, 128
        %513 = vxpose.xlu0.b32.cont [9/16] 0.0, 128
        %514 = vxpose.xlu0.b32.cont [10/16] 0.0, 128
        %515 = vxpose.xlu0.b32.cont [11/16] 0.0, 128
        %516 = vxpose.xlu0.b32.cont [12/16] 0.0, 128
        %517 = vxpose.xlu0.b32.cont [13/16] 0.0, 128
        %518 = vxpose.xlu0.b32.cont [14/16] 0.0, 128
        %519 = vxpose.xlu0.b32.cont [15/16] 0.0, 128
        %520 = vxpose.xlu0.b32.end [16/16] 0.0, 128
        %v521 = vpop.trf.xlu0
        %v522 = vpop.trf.xlu0
        %v523 = vpop.trf.xlu0
        %v524 = vpop.trf.xlu0
        %v525 = vpop.trf.xlu0
        %v526 = vpop.trf.xlu0
        %v527 = vpop.trf.xlu0
        %v528 = vpop.trf.xlu0
        %v529 = vpop.trf.xlu0
        %v530 = vpop.trf.xlu0
        %v531 = vpop.trf.xlu0
        %v532 = vpop.trf.xlu0
        %v533 = vpop.trf.xlu0
        %v534 = vpop.trf.xlu0
        %v535 = vpop.trf.xlu0
        %v536 = vpop.trf.xlu0
        %537 = vxpose.xlu0.b32.start [1/16] %v329, 128
        %538 = vxpose.xlu0.b32.cont [2/16] 0.0, 128
        %539 = vxpose.xlu0.b32.cont [3/16] 0.0, 128
        %540 = vxpose.xlu0.b32.cont [4/16] 0.0, 128
        %541 = vxpose.xlu0.b32.cont [5/16] 0.0, 128
        %542 = vxpose.xlu0.b32.cont [6/16] 0.0, 128
        %543 = vxpose.xlu0.b32.cont [7/16] 0.0, 128
        %544 = vxpose.xlu0.b32.cont [8/16] 0.0, 128
        %545 = vxpose.xlu0.b32.cont [9/16] 0.0, 128
        %546 = vxpose.xlu0.b32.cont [10/16] 0.0, 128
        %547 = vxpose.xlu0.b32.cont [11/16] 0.0, 128
        %548 = vxpose.xlu0.b32.cont [12/16] 0.0, 128
        %549 = vxpose.xlu0.b32.cont [13/16] 0.0, 128
        %550 = vxpose.xlu0.b32.cont [14/16] 0.0, 128
        %551 = vxpose.xlu0.b32.cont [15/16] 0.0, 128
        %552 = vxpose.xlu0.b32.end [16/16] 0.0, 128
        %v553 = vpop.trf.xlu0
        %v554 = vpop.trf.xlu0
        %v555 = vpop.trf.xlu0
        %v556 = vpop.trf.xlu0
        %v557 = vpop.trf.xlu0
        %v558 = vpop.trf.xlu0
        %v559 = vpop.trf.xlu0
        %v560 = vpop.trf.xlu0
        %v561 = vpop.trf.xlu0
        %v562 = vpop.trf.xlu0
        %v563 = vpop.trf.xlu0
        %v564 = vpop.trf.xlu0
        %v565 = vpop.trf.xlu0
        %v566 = vpop.trf.xlu0
        %v567 = vpop.trf.xlu0
        %v568 = vpop.trf.xlu0
        %569 = vxpose.xlu0.b32.start [1/16] %v339, 128
        %570 = vxpose.xlu0.b32.cont [2/16] 0.0, 128
        %571 = vxpose.xlu0.b32.cont [3/16] 0.0, 128
        %572 = vxpose.xlu0.b32.cont [4/16] 0.0, 128
        %573 = vxpose.xlu0.b32.cont [5/16] 0.0, 128
        %574 = vxpose.xlu0.b32.cont [6/16] 0.0, 128
        %575 = vxpose.xlu0.b32.cont [7/16] 0.0, 128
        %576 = vxpose.xlu0.b32.cont [8/16] 0.0, 128
        %577 = vxpose.xlu0.b32.cont [9/16] 0.0, 128
        %578 = vxpose.xlu0.b32.cont [10/16] 0.0, 128
        %579 = vxpose.xlu0.b32.cont [11/16] 0.0, 128
        %580 = vxpose.xlu0.b32.cont [12/16] 0.0, 128
        %581 = vxpose.xlu0.b32.cont [13/16] 0.0, 128
        %582 = vxpose.xlu0.b32.cont [14/16] 0.0, 128
        %583 = vxpose.xlu0.b32.cont [15/16] 0.0, 128
        %584 = vxpose.xlu0.b32.end [16/16] 0.0, 128
        %v585 = vpop.trf.xlu0
        %v586 = vpop.trf.xlu0
        %v587 = vpop.trf.xlu0
        %v588 = vpop.trf.xlu0
        %v589 = vpop.trf.xlu0
        %v590 = vpop.trf.xlu0
        %v591 = vpop.trf.xlu0
        %v592 = vpop.trf.xlu0
        %v593 = vpop.trf.xlu0
        %v594 = vpop.trf.xlu0
        %v595 = vpop.trf.xlu0
        %v596 = vpop.trf.xlu0
        %v597 = vpop.trf.xlu0
        %v598 = vpop.trf.xlu0
        %v599 = vpop.trf.xlu0
        %v600 = vpop.trf.xlu0
        %601 = vxpose.xlu0.b32.start [1/16] %v336, 128
        %602 = vxpose.xlu0.b32.cont [2/16] 0.0, 128
        %603 = vxpose.xlu0.b32.cont [3/16] 0.0, 128
        %604 = vxpose.xlu0.b32.cont [4/16] 0.0, 128
        %605 = vxpose.xlu0.b32.cont [5/16] 0.0, 128
        %606 = vxpose.xlu0.b32.cont [6/16] 0.0, 128
        %607 = vxpose.xlu0.b32.cont [7/16] 0.0, 128
        %608 = vxpose.xlu0.b32.cont [8/16] 0.0, 128
        %609 = vxpose.xlu0.b32.cont [9/16] 0.0, 128
        %610 = vxpose.xlu0.b32.cont [10/16] 0.0, 128
        %611 = vxpose.xlu0.b32.cont [11/16] 0.0, 128
        %612 = vxpose.xlu0.b32.cont [12/16] 0.0, 128
        %613 = vxpose.xlu0.b32.cont [13/16] 0.0, 128
        %614 = vxpose.xlu0.b32.cont [14/16] 0.0, 128
        %615 = vxpose.xlu0.b32.cont [15/16] 0.0, 128
        %616 = vxpose.xlu0.b32.end [16/16] 0.0, 128
        %v617 = vpop.trf.xlu0
        %v618 = vpop.trf.xlu0
        %v619 = vpop.trf.xlu0
        %v620 = vpop.trf.xlu0
        %v621 = vpop.trf.xlu0
        %v622 = vpop.trf.xlu0
        %v623 = vpop.trf.xlu0
        %v624 = vpop.trf.xlu0
        %v625 = vpop.trf.xlu0
        %v626 = vpop.trf.xlu0
        %v627 = vpop.trf.xlu0
        %v628 = vpop.trf.xlu0
        %v629 = vpop.trf.xlu0
        %v630 = vpop.trf.xlu0
        %v631 = vpop.trf.xlu0
        %v632 = vpop.trf.xlu0
        %633 = vxpose.xlu0.b32.start [1/16] %v340, 128
        %634 = vxpose.xlu0.b32.cont [2/16] 0.0, 128
        %635 = vxpose.xlu0.b32.cont [3/16] 0.0, 128
        %636 = vxpose.xlu0.b32.cont [4/16] 0.0, 128
        %637 = vxpose.xlu0.b32.cont [5/16] 0.0, 128
        %638 = vxpose.xlu0.b32.cont [6/16] 0.0, 128
        %639 = vxpose.xlu0.b32.cont [7/16] 0.0, 128
        %640 = vxpose.xlu0.b32.cont [8/16] 0.0, 128
        %641 = vxpose.xlu0.b32.cont [9/16] 0.0, 128
        %642 = vxpose.xlu0.b32.cont [10/16] 0.0, 128
        %643 = vxpose.xlu0.b32.cont [11/16] 0.0, 128
        %644 = vxpose.xlu0.b32.cont [12/16] 0.0, 128
        %645 = vxpose.xlu0.b32.cont [13/16] 0.0, 128
        %646 = vxpose.xlu0.b32.cont [14/16] 0.0, 128
        %647 = vxpose.xlu0.b32.cont [15/16] 0.0, 128
        %648 = vxpose.xlu0.b32.end [16/16] 0.0, 128
        %v649 = vpop.trf.xlu0
        %v650 = vpop.trf.xlu0
        %v651 = vpop.trf.xlu0
        %v652 = vpop.trf.xlu0
        %v653 = vpop.trf.xlu0
        %v654 = vpop.trf.xlu0
        %v655 = vpop.trf.xlu0
        %v656 = vpop.trf.xlu0
        %v657 = vpop.trf.xlu0
        %v658 = vpop.trf.xlu0
        %v659 = vpop.trf.xlu0
        %v660 = vpop.trf.xlu0
        %v661 = vpop.trf.xlu0
        %v662 = vpop.trf.xlu0
        %v663 = vpop.trf.xlu0
        %v664 = vpop.trf.xlu0
        %665 = vxpose.xlu0.b32.start [1/16] %v381, 128
        %666 = vxpose.xlu0.b32.cont [2/16] 0.0, 128
        %667 = vxpose.xlu0.b32.cont [3/16] 0.0, 128
        %668 = vxpose.xlu0.b32.cont [4/16] 0.0, 128
        %669 = vxpose.xlu0.b32.cont [5/16] 0.0, 128
        %670 = vxpose.xlu0.b32.cont [6/16] 0.0, 128
        %671 = vxpose.xlu0.b32.cont [7/16] 0.0, 128
        %672 = vxpose.xlu0.b32.cont [8/16] 0.0, 128
        %673 = vxpose.xlu0.b32.cont [9/16] 0.0, 128
        %674 = vxpose.xlu0.b32.cont [10/16] 0.0, 128
        %675 = vxpose.xlu0.b32.cont [11/16] 0.0, 128
        %676 = vxpose.xlu0.b32.cont [12/16] 0.0, 128
        %677 = vxpose.xlu0.b32.cont [13/16] 0.0, 128
        %678 = vxpose.xlu0.b32.cont [14/16] 0.0, 128
        %679 = vxpose.xlu0.b32.cont [15/16] 0.0, 128
        %680 = vxpose.xlu0.b32.end [16/16] 0.0, 128
        %v681 = vpop.trf.xlu0
        %v682 = vpop.trf.xlu0
        %v683 = vpop.trf.xlu0
        %v684 = vpop.trf.xlu0
        %v685 = vpop.trf.xlu0
        %v686 = vpop.trf.xlu0
        %v687 = vpop.trf.xlu0
        %v688 = vpop.trf.xlu0
        %v689 = vpop.trf.xlu0
        %v690 = vpop.trf.xlu0
        %v691 = vpop.trf.xlu0
        %v692 = vpop.trf.xlu0
        %v693 = vpop.trf.xlu0
        %v694 = vpop.trf.xlu0
        %v695 = vpop.trf.xlu0
        %v696 = vpop.trf.xlu0
        %697 = vxpose.xlu0.b32.start [1/16] %v405, 128
        %698 = vxpose.xlu0.b32.cont [2/16] 0.0, 128
        %699 = vxpose.xlu0.b32.cont [3/16] 0.0, 128
        %700 = vxpose.xlu0.b32.cont [4/16] 0.0, 128
        %701 = vxpose.xlu0.b32.cont [5/16] 0.0, 128
        %702 = vxpose.xlu0.b32.cont [6/16] 0.0, 128
        %703 = vxpose.xlu0.b32.cont [7/16] 0.0, 128
        %704 = vxpose.xlu0.b32.cont [8/16] 0.0, 128
        %705 = vxpose.xlu0.b32.cont [9/16] 0.0, 128
        %706 = vxpose.xlu0.b32.cont [10/16] 0.0, 128
        %707 = vxpose.xlu0.b32.cont [11/16] 0.0, 128
        %708 = vxpose.xlu0.b32.cont [12/16] 0.0, 128
        %709 = vxpose.xlu0.b32.cont [13/16] 0.0, 128
        %710 = vxpose.xlu0.b32.cont [14/16] 0.0, 128
        %711 = vxpose.xlu0.b32.cont [15/16] 0.0, 128
        %712 = vxpose.xlu0.b32.end [16/16] 0.0, 128
        %v713 = vpop.trf.xlu0
        %v714 = vpop.trf.xlu0
        %v715 = vpop.trf.xlu0
        %v716 = vpop.trf.xlu0
        %v717 = vpop.trf.xlu0
        %v718 = vpop.trf.xlu0
        %v719 = vpop.trf.xlu0
        %v720 = vpop.trf.xlu0
        %v721 = vpop.trf.xlu0
        %v722 = vpop.trf.xlu0
        %v723 = vpop.trf.xlu0
        %v724 = vpop.trf.xlu0
        %v725 = vpop.trf.xlu0
        %v726 = vpop.trf.xlu0
        %v727 = vpop.trf.xlu0
        %v728 = vpop.trf.xlu0
        %729 = vxpose.xlu0.b32.start [1/16] %v388, 128
        %730 = vxpose.xlu0.b32.cont [2/16] 0.0, 128
        %731 = vxpose.xlu0.b32.cont [3/16] 0.0, 128
        %732 = vxpose.xlu0.b32.cont [4/16] 0.0, 128
        %733 = vxpose.xlu0.b32.cont [5/16] 0.0, 128
        %734 = vxpose.xlu0.b32.cont [6/16] 0.0, 128
        %735 = vxpose.xlu0.b32.cont [7/16] 0.0, 128
        %736 = vxpose.xlu0.b32.cont [8/16] 0.0, 128
        %737 = vxpose.xlu0.b32.cont [9/16] 0.0, 128
        %738 = vxpose.xlu0.b32.cont [10/16] 0.0, 128
        %739 = vxpose.xlu0.b32.cont [11/16] 0.0, 128
        %740 = vxpose.xlu0.b32.cont [12/16] 0.0, 128
        %741 = vxpose.xlu0.b32.cont [13/16] 0.0, 128
        %742 = vxpose.xlu0.b32.cont [14/16] 0.0, 128
        %743 = vxpose.xlu0.b32.cont [15/16] 0.0, 128
        %744 = vxpose.xlu0.b32.end [16/16] 0.0, 128
        %v745 = vpop.trf.xlu0
        %v746 = vpop.trf.xlu0
        %v747 = vpop.trf.xlu0
        %v748 = vpop.trf.xlu0
        %v749 = vpop.trf.xlu0
        %v750 = vpop.trf.xlu0
        %v751 = vpop.trf.xlu0
        %v752 = vpop.trf.xlu0
        %v753 = vpop.trf.xlu0
        %v754 = vpop.trf.xlu0
        %v755 = vpop.trf.xlu0
        %v756 = vpop.trf.xlu0
        %v757 = vpop.trf.xlu0
        %v758 = vpop.trf.xlu0
        %v759 = vpop.trf.xlu0
        %v760 = vpop.trf.xlu0
        %761 = vxpose.xlu0.b32.start [1/16] %v406, 128
        %762 = vxpose.xlu0.b32.cont [2/16] 0.0, 128
        %763 = vxpose.xlu0.b32.cont [3/16] 0.0, 128
        %764 = vxpose.xlu0.b32.cont [4/16] 0.0, 128
        %765 = vxpose.xlu0.b32.cont [5/16] 0.0, 128
        %766 = vxpose.xlu0.b32.cont [6/16] 0.0, 128
        %767 = vxpose.xlu0.b32.cont [7/16] 0.0, 128
        %768 = vxpose.xlu0.b32.cont [8/16] 0.0, 128
        %769 = vxpose.xlu0.b32.cont [9/16] 0.0, 128
        %770 = vxpose.xlu0.b32.cont [10/16] 0.0, 128
        %771 = vxpose.xlu0.b32.cont [11/16] 0.0, 128
        %772 = vxpose.xlu0.b32.cont [12/16] 0.0, 128
        %773 = vxpose.xlu0.b32.cont [13/16] 0.0, 128
        %774 = vxpose.xlu0.b32.cont [14/16] 0.0, 128
        %775 = vxpose.xlu0.b32.cont [15/16] 0.0, 128
        %776 = vxpose.xlu0.b32.end [16/16] 0.0, 128
        %v777 = vpop.trf.xlu0
        %v778 = vpop.trf.xlu0
        %v779 = vpop.trf.xlu0
        %v780 = vpop.trf.xlu0
        %v781 = vpop.trf.xlu0
        %v782 = vpop.trf.xlu0
        %v783 = vpop.trf.xlu0
        %v784 = vpop.trf.xlu0
        %v785 = vpop.trf.xlu0
        %v786 = vpop.trf.xlu0
        %v787 = vpop.trf.xlu0
        %v788 = vpop.trf.xlu0
        %v789 = vpop.trf.xlu0
        %v790 = vpop.trf.xlu0
        %v791 = vpop.trf.xlu0
        %v792 = vpop.trf.xlu0
        %793 = vxpose.xlu0.b32.start [1/16] %v397, 128
        %794 = vxpose.xlu0.b32.cont [2/16] 0.0, 128
        %795 = vxpose.xlu0.b32.cont [3/16] 0.0, 128
        %796 = vxpose.xlu0.b32.cont [4/16] 0.0, 128
        %797 = vxpose.xlu0.b32.cont [5/16] 0.0, 128
        %798 = vxpose.xlu0.b32.cont [6/16] 0.0, 128
        %799 = vxpose.xlu0.b32.cont [7/16] 0.0, 128
        %800 = vxpose.xlu0.b32.cont [8/16] 0.0, 128
        %801 = vxpose.xlu0.b32.cont [9/16] 0.0, 128
        %802 = vxpose.xlu0.b32.cont [10/16] 0.0, 128
        %803 = vxpose.xlu0.b32.cont [11/16] 0.0, 128
        %804 = vxpose.xlu0.b32.cont [12/16] 0.0, 128
        %805 = vxpose.xlu0.b32.cont [13/16] 0.0, 128
        %806 = vxpose.xlu0.b32.cont [14/16] 0.0, 128
        %807 = vxpose.xlu0.b32.cont [15/16] 0.0, 128
        %808 = vxpose.xlu0.b32.end [16/16] 0.0, 128
        %v809 = vpop.trf.xlu0
        %v810 = vpop.trf.xlu0
        %v811 = vpop.trf.xlu0
        %v812 = vpop.trf.xlu0
        %v813 = vpop.trf.xlu0
        %v814 = vpop.trf.xlu0
        %v815 = vpop.trf.xlu0
        %v816 = vpop.trf.xlu0
        %v817 = vpop.trf.xlu0
        %v818 = vpop.trf.xlu0
        %v819 = vpop.trf.xlu0
        %v820 = vpop.trf.xlu0
        %v821 = vpop.trf.xlu0
        %v822 = vpop.trf.xlu0
        %v823 = vpop.trf.xlu0
        %v824 = vpop.trf.xlu0
        %825 = vxpose.xlu0.b32.start [1/16] %v407, 128
        %826 = vxpose.xlu0.b32.cont [2/16] 0.0, 128
        %827 = vxpose.xlu0.b32.cont [3/16] 0.0, 128
        %828 = vxpose.xlu0.b32.cont [4/16] 0.0, 128
        %829 = vxpose.xlu0.b32.cont [5/16] 0.0, 128
        %830 = vxpose.xlu0.b32.cont [6/16] 0.0, 128
        %831 = vxpose.xlu0.b32.cont [7/16] 0.0, 128
        %832 = vxpose.xlu0.b32.cont [8/16] 0.0, 128
        %833 = vxpose.xlu0.b32.cont [9/16] 0.0, 128
        %834 = vxpose.xlu0.b32.cont [10/16] 0.0, 128
        %835 = vxpose.xlu0.b32.cont [11/16] 0.0, 128
        %836 = vxpose.xlu0.b32.cont [12/16] 0.0, 128
        %837 = vxpose.xlu0.b32.cont [13/16] 0.0, 128
        %838 = vxpose.xlu0.b32.cont [14/16] 0.0, 128
        %839 = vxpose.xlu0.b32.cont [15/16] 0.0, 128
        %840 = vxpose.xlu0.b32.end [16/16] 0.0, 128
        %v841 = vpop.trf.xlu0
        %v842 = vpop.trf.xlu0
        %v843 = vpop.trf.xlu0
        %v844 = vpop.trf.xlu0
        %v845 = vpop.trf.xlu0
        %v846 = vpop.trf.xlu0
        %v847 = vpop.trf.xlu0
        %v848 = vpop.trf.xlu0
        %v849 = vpop.trf.xlu0
        %v850 = vpop.trf.xlu0
        %v851 = vpop.trf.xlu0
        %v852 = vpop.trf.xlu0
        %v853 = vpop.trf.xlu0
        %v854 = vpop.trf.xlu0
        %v855 = vpop.trf.xlu0
        %v856 = vpop.trf.xlu0
        %857 = vxpose.xlu0.b32.start [1/16] %v404, 128
        %858 = vxpose.xlu0.b32.cont [2/16] 0.0, 128
        %859 = vxpose.xlu0.b32.cont [3/16] 0.0, 128
        %860 = vxpose.xlu0.b32.cont [4/16] 0.0, 128
        %861 = vxpose.xlu0.b32.cont [5/16] 0.0, 128
        %862 = vxpose.xlu0.b32.cont [6/16] 0.0, 128
        %863 = vxpose.xlu0.b32.cont [7/16] 0.0, 128
        %864 = vxpose.xlu0.b32.cont [8/16] 0.0, 128
        %865 = vxpose.xlu0.b32.cont [9/16] 0.0, 128
        %866 = vxpose.xlu0.b32.cont [10/16] 0.0, 128
        %867 = vxpose.xlu0.b32.cont [11/16] 0.0, 128
        %868 = vxpose.xlu0.b32.cont [12/16] 0.0, 128
        %869 = vxpose.xlu0.b32.cont [13/16] 0.0, 128
        %870 = vxpose.xlu0.b32.cont [14/16] 0.0, 128
        %871 = vxpose.xlu0.b32.cont [15/16] 0.0, 128
        %872 = vxpose.xlu0.b32.end [16/16] 0.0, 128
        %v873 = vpop.trf.xlu0
        %v874 = vpop.trf.xlu0
        %v875 = vpop.trf.xlu0
        %v876 = vpop.trf.xlu0
        %v877 = vpop.trf.xlu0
        %v878 = vpop.trf.xlu0
        %v879 = vpop.trf.xlu0
        %v880 = vpop.trf.xlu0
        %v881 = vpop.trf.xlu0
        %v882 = vpop.trf.xlu0
        %v883 = vpop.trf.xlu0
        %v884 = vpop.trf.xlu0
        %v885 = vpop.trf.xlu0
        %v886 = vpop.trf.xlu0
        %v887 = vpop.trf.xlu0
        %v888 = vpop.trf.xlu0
        %889 = vxpose.xlu0.b32.start [1/16] %v408, 128
        %890 = vxpose.xlu0.b32.cont [2/16] 0.0, 128
        %891 = vxpose.xlu0.b32.cont [3/16] 0.0, 128
        %892 = vxpose.xlu0.b32.cont [4/16] 0.0, 128
        %893 = vxpose.xlu0.b32.cont [5/16] 0.0, 128
        %894 = vxpose.xlu0.b32.cont [6/16] 0.0, 128
        %895 = vxpose.xlu0.b32.cont [7/16] 0.0, 128
        %896 = vxpose.xlu0.b32.cont [8/16] 0.0, 128
        %897 = vxpose.xlu0.b32.cont [9/16] 0.0, 128
        %898 = vxpose.xlu0.b32.cont [10/16] 0.0, 128
        %899 = vxpose.xlu0.b32.cont [11/16] 0.0, 128
        %900 = vxpose.xlu0.b32.cont [12/16] 0.0, 128
        %901 = vxpose.xlu0.b32.cont [13/16] 0.0, 128
        %902 = vxpose.xlu0.b32.cont [14/16] 0.0, 128
        %903 = vxpose.xlu0.b32.cont [15/16] 0.0, 128
        %904 = vxpose.xlu0.b32.end [16/16] 0.0, 128
        %v905 = vpop.trf.xlu0
        %v906 = vpop.trf.xlu0
        %v907 = vpop.trf.xlu0
        %v908 = vpop.trf.xlu0
        %v909 = vpop.trf.xlu0
        %v910 = vpop.trf.xlu0
        %v911 = vpop.trf.xlu0
        %v912 = vpop.trf.xlu0
        %v913 = vpop.trf.xlu0
        %v914 = vpop.trf.xlu0
        %v915 = vpop.trf.xlu0
        %v916 = vpop.trf.xlu0
        %v917 = vpop.trf.xlu0
        %v918 = vpop.trf.xlu0
        %v919 = vpop.trf.xlu0
        %v920 = vpop.trf.xlu0
        %v921 = vcombine.low %v425, %v489
        %v922 = vcombine.high %v425, %v489
        %v924 = vunpack.c.l.s4 1983009808
        %v925 = vunpack.c.0.s8 %v924
        %v926 = vlaneseq
        %v927 = vshrl.u32 %v926, 7
        %v928 = vsub.s32 %v925, %v927
        %v929 = vrot.slane %v921, %v928
        %v931 = vunpack.c.l.s4 1983009808
        %v932 = vunpack.c.0.s8 %v931
        %v933 = vlaneseq
        %v934 = vshrl.u32 %v933, 7
        %v935 = vsub.s32 %v932, %v934
        %v936 = vrot.slane %v922, %v935
        %v937 = vcombine.low %v457, %v521
        %v938 = vcombine.high %v457, %v521
        %v940 = vunpack.c.l.s4 1983009808
        %v941 = vunpack.c.0.s8 %v940
        %v942 = vlaneseq
        %v943 = vshrl.u32 %v942, 7
        %v944 = vsub.s32 %v941, %v943
        %v945 = vrot.slane %v937, %v944
        %v947 = vunpack.c.l.s4 1983009808
        %v948 = vunpack.c.0.s8 %v947
        %v949 = vlaneseq
        %v950 = vshrl.u32 %v949, 7
        %v951 = vsub.s32 %v948, %v950
        %v952 = vrot.slane %v938, %v951
        %v953 = vcombine.low %v553, %v617
        %v954 = vcombine.high %v553, %v617
        %v956 = vunpack.c.l.s4 1983009808
        %v957 = vunpack.c.0.s8 %v956
        %v958 = vlaneseq
        %v959 = vshrl.u32 %v958, 7
        %v960 = vsub.s32 %v957, %v959
        %v961 = vrot.slane %v953, %v960
        %v963 = vunpack.c.l.s4 1983009808
        %v964 = vunpack.c.0.s8 %v963
        %v965 = vlaneseq
        %v966 = vshrl.u32 %v965, 7
        %v967 = vsub.s32 %v964, %v966
        %v968 = vrot.slane %v954, %v967
        %v969 = vcombine.low %v585, %v649
        %v970 = vcombine.high %v585, %v649
        %v972 = vunpack.c.l.s4 1983009808
        %v973 = vunpack.c.0.s8 %v972
        %v974 = vlaneseq
        %v975 = vshrl.u32 %v974, 7
        %v976 = vsub.s32 %v973, %v975
        %v977 = vrot.slane %v969, %v976
        %v979 = vunpack.c.l.s4 1983009808
        %v980 = vunpack.c.0.s8 %v979
        %v981 = vlaneseq
        %v982 = vshrl.u32 %v981, 7
        %v983 = vsub.s32 %v980, %v982
        %v984 = vrot.slane %v970, %v983
        %v985 = vcombine.low %v929, %v945
        %v986 = vcombine.high %v929, %v945
        %v988 = vunpack.c.l.s4 1934713408
        %v989 = vunpack.c.0.s8 %v988
        %v990 = vlaneseq
        %v991 = vshrl.u32 %v990, 7
        %v992 = vsub.s32 %v989, %v991
        %v993 = vrot.slane %v985, %v992
        %v995 = vunpack.c.l.s4 1934713408
        %v996 = vunpack.c.0.s8 %v995
        %v997 = vlaneseq
        %v998 = vshrl.u32 %v997, 7
        %v999 = vsub.s32 %v996, %v998
        %v1000 = vrot.slane %v986, %v999
        %v1001 = vcombine.low %v936, %v952
        %v1002 = vcombine.high %v936, %v952
        %v1004 = vunpack.c.l.s4 1934713408
        %v1005 = vunpack.c.0.s8 %v1004
        %v1006 = vlaneseq
        %v1007 = vshrl.u32 %v1006, 7
        %v1008 = vsub.s32 %v1005, %v1007
        %v1009 = vrot.slane %v1001, %v1008
        %v1011 = vunpack.c.l.s4 1934713408
        %v1012 = vunpack.c.0.s8 %v1011
        %v1013 = vlaneseq
        %v1014 = vshrl.u32 %v1013, 7
        %v1015 = vsub.s32 %v1012, %v1014
        %v1016 = vrot.slane %v1002, %v1015
        %v1017 = vcombine.low %v961, %v977
        %v1018 = vcombine.high %v961, %v977
        %v1020 = vunpack.c.l.s4 1934713408
        %v1021 = vunpack.c.0.s8 %v1020
        %v1022 = vlaneseq
        %v1023 = vshrl.u32 %v1022, 7
        %v1024 = vsub.s32 %v1021, %v1023
        %v1025 = vrot.slane %v1017, %v1024
        %v1027 = vunpack.c.l.s4 1934713408
        %v1028 = vunpack.c.0.s8 %v1027
        %v1029 = vlaneseq
        %v1030 = vshrl.u32 %v1029, 7
        %v1031 = vsub.s32 %v1028, %v1030
        %v1032 = vrot.slane %v1018, %v1031
        %v1033 = vcombine.low %v968, %v984
        %v1034 = vcombine.high %v968, %v984
        %v1036 = vunpack.c.l.s4 1934713408
        %v1037 = vunpack.c.0.s8 %v1036
        %v1038 = vlaneseq
        %v1039 = vshrl.u32 %v1038, 7
        %v1040 = vsub.s32 %v1037, %v1039
        %v1041 = vrot.slane %v1033, %v1040
        %v1043 = vunpack.c.l.s4 1934713408
        %v1044 = vunpack.c.0.s8 %v1043
        %v1045 = vlaneseq
        %v1046 = vshrl.u32 %v1045, 7
        %v1047 = vsub.s32 %v1044, %v1046
        %v1048 = vrot.slane %v1034, %v1047
        %v1049 = vcombine.low %v993, %v1025
        %v1050 = vcombine.high %v993, %v1025
        %v1051 = vcombine.low %v1000, %v1032
        %v1052 = vcombine.high %v1000, %v1032
        %v1053 = vcombine.low %v1009, %v1041
        %v1054 = vcombine.high %v1009, %v1041
        %v1055 = vcombine.low %v1016, %v1048
        %v1056 = vcombine.high %v1016, %v1048
        %v1057 = vcombine.low %v681, %v745
        %v1058 = vcombine.high %v681, %v745
        %v1060 = vunpack.c.l.s4 1983009808
        %v1061 = vunpack.c.0.s8 %v1060
        %v1062 = vlaneseq
        %v1063 = vshrl.u32 %v1062, 7
        %v1064 = vsub.s32 %v1061, %v1063
        %v1065 = vrot.slane %v1057, %v1064
        %v1067 = vunpack.c.l.s4 1983009808
        %v1068 = vunpack.c.0.s8 %v1067
        %v1069 = vlaneseq
        %v1070 = vshrl.u32 %v1069, 7
        %v1071 = vsub.s32 %v1068, %v1070
        %v1072 = vrot.slane %v1058, %v1071
        %v1073 = vcombine.low %v713, %v777
        %v1074 = vcombine.high %v713, %v777
        %v1076 = vunpack.c.l.s4 1983009808
        %v1077 = vunpack.c.0.s8 %v1076
        %v1078 = vlaneseq
        %v1079 = vshrl.u32 %v1078, 7
        %v1080 = vsub.s32 %v1077, %v1079
        %v1081 = vrot.slane %v1073, %v1080
        %v1083 = vunpack.c.l.s4 1983009808
        %v1084 = vunpack.c.0.s8 %v1083
        %v1085 = vlaneseq
        %v1086 = vshrl.u32 %v1085, 7
        %v1087 = vsub.s32 %v1084, %v1086
        %v1088 = vrot.slane %v1074, %v1087
        %v1089 = vcombine.low %v809, %v873
        %v1090 = vcombine.high %v809, %v873
        %v1092 = vunpack.c.l.s4 1983009808
        %v1093 = vunpack.c.0.s8 %v1092
        %v1094 = vlaneseq
        %v1095 = vshrl.u32 %v1094, 7
        %v1096 = vsub.s32 %v1093, %v1095
        %v1097 = vrot.slane %v1089, %v1096
        %v1099 = vunpack.c.l.s4 1983009808
        %v1100 = vunpack.c.0.s8 %v1099
        %v1101 = vlaneseq
        %v1102 = vshrl.u32 %v1101, 7
        %v1103 = vsub.s32 %v1100, %v1102
        %v1104 = vrot.slane %v1090, %v1103
        %v1105 = vcombine.low %v841, %v905
        %v1106 = vcombine.high %v841, %v905
        %v1108 = vunpack.c.l.s4 1983009808
        %v1109 = vunpack.c.0.s8 %v1108
        %v1110 = vlaneseq
        %v1111 = vshrl.u32 %v1110, 7
        %v1112 = vsub.s32 %v1109, %v1111
        %v1113 = vrot.slane %v1105, %v1112
        %v1115 = vunpack.c.l.s4 1983009808
        %v1116 = vunpack.c.0.s8 %v1115
        %v1117 = vlaneseq
        %v1118 = vshrl.u32 %v1117, 7
        %v1119 = vsub.s32 %v1116, %v1118
        %v1120 = vrot.slane %v1106, %v1119
        %v1121 = vcombine.low %v1065, %v1081
        %v1122 = vcombine.high %v1065, %v1081
        %v1124 = vunpack.c.l.s4 1934713408
        %v1125 = vunpack.c.0.s8 %v1124
        %v1126 = vlaneseq
        %v1127 = vshrl.u32 %v1126, 7
        %v1128 = vsub.s32 %v1125, %v1127
        %v1129 = vrot.slane %v1121, %v1128
        %v1131 = vunpack.c.l.s4 1934713408
        %v1132 = vunpack.c.0.s8 %v1131
        %v1133 = vlaneseq
        %v1134 = vshrl.u32 %v1133, 7
        %v1135 = vsub.s32 %v1132, %v1134
        %v1136 = vrot.slane %v1122, %v1135
        %v1137 = vcombine.low %v1072, %v1088
        %v1138 = vcombine.high %v1072, %v1088
        %v1140 = vunpack.c.l.s4 1934713408
        %v1141 = vunpack.c.0.s8 %v1140
        %v1142 = vlaneseq
        %v1143 = vshrl.u32 %v1142, 7
        %v1144 = vsub.s32 %v1141, %v1143
        %v1145 = vrot.slane %v1137, %v1144
        %v1147 = vunpack.c.l.s4 1934713408
        %v1148 = vunpack.c.0.s8 %v1147
        %v1149 = vlaneseq
        %v1150 = vshrl.u32 %v1149, 7
        %v1151 = vsub.s32 %v1148, %v1150
        %v1152 = vrot.slane %v1138, %v1151
        %v1153 = vcombine.low %v1097, %v1113
        %v1154 = vcombine.high %v1097, %v1113
        %v1156 = vunpack.c.l.s4 1934713408
        %v1157 = vunpack.c.0.s8 %v1156
        %v1158 = vlaneseq
        %v1159 = vshrl.u32 %v1158, 7
        %v1160 = vsub.s32 %v1157, %v1159
        %v1161 = vrot.slane %v1153, %v1160
        %v1163 = vunpack.c.l.s4 1934713408
        %v1164 = vunpack.c.0.s8 %v1163
        %v1165 = vlaneseq
        %v1166 = vshrl.u32 %v1165, 7
        %v1167 = vsub.s32 %v1164, %v1166
        %v1168 = vrot.slane %v1154, %v1167
        %v1169 = vcombine.low %v1104, %v1120
        %v1170 = vcombine.high %v1104, %v1120
        %v1172 = vunpack.c.l.s4 1934713408
        %v1173 = vunpack.c.0.s8 %v1172
        %v1174 = vlaneseq
        %v1175 = vshrl.u32 %v1174, 7
        %v1176 = vsub.s32 %v1173, %v1175
        %v1177 = vrot.slane %v1169, %v1176
        %v1179 = vunpack.c.l.s4 1934713408
        %v1180 = vunpack.c.0.s8 %v1179
        %v1181 = vlaneseq
        %v1182 = vshrl.u32 %v1181, 7
        %v1183 = vsub.s32 %v1180, %v1182
        %v1184 = vrot.slane %v1170, %v1183
        %v1185 = vcombine.low %v1129, %v1161
        %v1186 = vcombine.high %v1129, %v1161
        %v1187 = vcombine.low %v1136, %v1168
        %v1188 = vcombine.high %v1136, %v1168
        %v1189 = vcombine.low %v1145, %v1177
        %v1190 = vcombine.high %v1145, %v1177
        %v1191 = vcombine.low %v1152, %v1184
        %v1192 = vcombine.high %v1152, %v1184
        %v1193 = vcombine.low %v426, %v490
        %v1194 = vcombine.high %v426, %v490
        %v1196 = vunpack.c.l.s4 1983009808
        %v1197 = vunpack.c.0.s8 %v1196
        %v1198 = vlaneseq
        %v1199 = vshrl.u32 %v1198, 7
        %v1200 = vsub.s32 %v1197, %v1199
        %v1201 = vrot.slane %v1193, %v1200
        %v1203 = vunpack.c.l.s4 1983009808
        %v1204 = vunpack.c.0.s8 %v1203
        %v1205 = vlaneseq
        %v1206 = vshrl.u32 %v1205, 7
        %v1207 = vsub.s32 %v1204, %v1206
        %v1208 = vrot.slane %v1194, %v1207
        %v1209 = vcombine.low %v458, %v522
        %v1210 = vcombine.high %v458, %v522
        %v1212 = vunpack.c.l.s4 1983009808
        %v1213 = vunpack.c.0.s8 %v1212
        %v1214 = vlaneseq
        %v1215 = vshrl.u32 %v1214, 7
        %v1216 = vsub.s32 %v1213, %v1215
        %v1217 = vrot.slane %v1209, %v1216
        %v1219 = vunpack.c.l.s4 1983009808
        %v1220 = vunpack.c.0.s8 %v1219
        %v1221 = vlaneseq
        %v1222 = vshrl.u32 %v1221, 7
        %v1223 = vsub.s32 %v1220, %v1222
        %v1224 = vrot.slane %v1210, %v1223
        %v1225 = vcombine.low %v554, %v618
        %v1226 = vcombine.high %v554, %v618
        %v1228 = vunpack.c.l.s4 1983009808
        %v1229 = vunpack.c.0.s8 %v1228
        %v1230 = vlaneseq
        %v1231 = vshrl.u32 %v1230, 7
        %v1232 = vsub.s32 %v1229, %v1231
        %v1233 = vrot.slane %v1225, %v1232
        %v1235 = vunpack.c.l.s4 1983009808
        %v1236 = vunpack.c.0.s8 %v1235
        %v1237 = vlaneseq
        %v1238 = vshrl.u32 %v1237, 7
        %v1239 = vsub.s32 %v1236, %v1238
        %v1240 = vrot.slane %v1226, %v1239
        %v1241 = vcombine.low %v586, %v650
        %v1242 = vcombine.high %v586, %v650
        %v1244 = vunpack.c.l.s4 1983009808
        %v1245 = vunpack.c.0.s8 %v1244
        %v1246 = vlaneseq
        %v1247 = vshrl.u32 %v1246, 7
        %v1248 = vsub.s32 %v1245, %v1247
        %v1249 = vrot.slane %v1241, %v1248
        %v1251 = vunpack.c.l.s4 1983009808
        %v1252 = vunpack.c.0.s8 %v1251
        %v1253 = vlaneseq
        %v1254 = vshrl.u32 %v1253, 7
        %v1255 = vsub.s32 %v1252, %v1254
        %v1256 = vrot.slane %v1242, %v1255
        %v1257 = vcombine.low %v1201, %v1217
        %v1258 = vcombine.high %v1201, %v1217
        %v1260 = vunpack.c.l.s4 1934713408
        %v1261 = vunpack.c.0.s8 %v1260
        %v1262 = vlaneseq
        %v1263 = vshrl.u32 %v1262, 7
        %v1264 = vsub.s32 %v1261, %v1263
        %v1265 = vrot.slane %v1257, %v1264
        %v1267 = vunpack.c.l.s4 1934713408
        %v1268 = vunpack.c.0.s8 %v1267
        %v1269 = vlaneseq
        %v1270 = vshrl.u32 %v1269, 7
        %v1271 = vsub.s32 %v1268, %v1270
        %v1272 = vrot.slane %v1258, %v1271
        %v1273 = vcombine.low %v1208, %v1224
        %v1274 = vcombine.high %v1208, %v1224
        %v1276 = vunpack.c.l.s4 1934713408
        %v1277 = vunpack.c.0.s8 %v1276
        %v1278 = vlaneseq
        %v1279 = vshrl.u32 %v1278, 7
        %v1280 = vsub.s32 %v1277, %v1279
        %v1281 = vrot.slane %v1273, %v1280
        %v1283 = vunpack.c.l.s4 1934713408
        %v1284 = vunpack.c.0.s8 %v1283
        %v1285 = vlaneseq
        %v1286 = vshrl.u32 %v1285, 7
        %v1287 = vsub.s32 %v1284, %v1286
        %v1288 = vrot.slane %v1274, %v1287
        %v1289 = vcombine.low %v1233, %v1249
        %v1290 = vcombine.high %v1233, %v1249
        %v1292 = vunpack.c.l.s4 1934713408
        %v1293 = vunpack.c.0.s8 %v1292
        %v1294 = vlaneseq
        %v1295 = vshrl.u32 %v1294, 7
        %v1296 = vsub.s32 %v1293, %v1295
        %v1297 = vrot.slane %v1289, %v1296
        %v1299 = vunpack.c.l.s4 1934713408
        %v1300 = vunpack.c.0.s8 %v1299
        %v1301 = vlaneseq
        %v1302 = vshrl.u32 %v1301, 7
        %v1303 = vsub.s32 %v1300, %v1302
        %v1304 = vrot.slane %v1290, %v1303
        %v1305 = vcombine.low %v1240, %v1256
        %v1306 = vcombine.high %v1240, %v1256
        %v1308 = vunpack.c.l.s4 1934713408
        %v1309 = vunpack.c.0.s8 %v1308
        %v1310 = vlaneseq
        %v1311 = vshrl.u32 %v1310, 7
        %v1312 = vsub.s32 %v1309, %v1311
        %v1313 = vrot.slane %v1305, %v1312
        %v1315 = vunpack.c.l.s4 1934713408
        %v1316 = vunpack.c.0.s8 %v1315
        %v1317 = vlaneseq
        %v1318 = vshrl.u32 %v1317, 7
        %v1319 = vsub.s32 %v1316, %v1318
        %v1320 = vrot.slane %v1306, %v1319
        %v1321 = vcombine.low %v1265, %v1297
        %v1322 = vcombine.high %v1265, %v1297
        %v1323 = vcombine.low %v1272, %v1304
        %v1324 = vcombine.high %v1272, %v1304
        %v1325 = vcombine.low %v1281, %v1313
        %v1326 = vcombine.high %v1281, %v1313
        %v1327 = vcombine.low %v1288, %v1320
        %v1328 = vcombine.high %v1288, %v1320
        %v1329 = vcombine.low %v682, %v746
        %v1330 = vcombine.high %v682, %v746
        %v1332 = vunpack.c.l.s4 1983009808
        %v1333 = vunpack.c.0.s8 %v1332
        %v1334 = vlaneseq
        %v1335 = vshrl.u32 %v1334, 7
        %v1336 = vsub.s32 %v1333, %v1335
        %v1337 = vrot.slane %v1329, %v1336
        %v1339 = vunpack.c.l.s4 1983009808
        %v1340 = vunpack.c.0.s8 %v1339
        %v1341 = vlaneseq
        %v1342 = vshrl.u32 %v1341, 7
        %v1343 = vsub.s32 %v1340, %v1342
        %v1344 = vrot.slane %v1330, %v1343
        %v1345 = vcombine.low %v714, %v778
        %v1346 = vcombine.high %v714, %v778
        %v1348 = vunpack.c.l.s4 1983009808
        %v1349 = vunpack.c.0.s8 %v1348
        %v1350 = vlaneseq
        %v1351 = vshrl.u32 %v1350, 7
        %v1352 = vsub.s32 %v1349, %v1351
        %v1353 = vrot.slane %v1345, %v1352
        %v1355 = vunpack.c.l.s4 1983009808
        %v1356 = vunpack.c.0.s8 %v1355
        %v1357 = vlaneseq
        %v1358 = vshrl.u32 %v1357, 7
        %v1359 = vsub.s32 %v1356, %v1358
        %v1360 = vrot.slane %v1346, %v1359
        %v1361 = vcombine.low %v810, %v874
        %v1362 = vcombine.high %v810, %v874
        %v1364 = vunpack.c.l.s4 1983009808
        %v1365 = vunpack.c.0.s8 %v1364
        %v1366 = vlaneseq
        %v1367 = vshrl.u32 %v1366, 7
        %v1368 = vsub.s32 %v1365, %v1367
        %v1369 = vrot.slane %v1361, %v1368
        %v1371 = vunpack.c.l.s4 1983009808
        %v1372 = vunpack.c.0.s8 %v1371
        %v1373 = vlaneseq
        %v1374 = vshrl.u32 %v1373, 7
        %v1375 = vsub.s32 %v1372, %v1374
        %v1376 = vrot.slane %v1362, %v1375
        %v1377 = vcombine.low %v842, %v906
        %v1378 = vcombine.high %v842, %v906
        %v1380 = vunpack.c.l.s4 1983009808
        %v1381 = vunpack.c.0.s8 %v1380
        %v1382 = vlaneseq
        %v1383 = vshrl.u32 %v1382, 7
        %v1384 = vsub.s32 %v1381, %v1383
        %v1385 = vrot.slane %v1377, %v1384
        %v1387 = vunpack.c.l.s4 1983009808
        %v1388 = vunpack.c.0.s8 %v1387
        %v1389 = vlaneseq
        %v1390 = vshrl.u32 %v1389, 7
        %v1391 = vsub.s32 %v1388, %v1390
        %v1392 = vrot.slane %v1378, %v1391
        %v1393 = vcombine.low %v1337, %v1353
        %v1394 = vcombine.high %v1337, %v1353
        %v1396 = vunpack.c.l.s4 1934713408
        %v1397 = vunpack.c.0.s8 %v1396
        %v1398 = vlaneseq
        %v1399 = vshrl.u32 %v1398, 7
        %v1400 = vsub.s32 %v1397, %v1399
        %v1401 = vrot.slane %v1393, %v1400
        %v1403 = vunpack.c.l.s4 1934713408
        %v1404 = vunpack.c.0.s8 %v1403
        %v1405 = vlaneseq
        %v1406 = vshrl.u32 %v1405, 7
        %v1407 = vsub.s32 %v1404, %v1406
        %v1408 = vrot.slane %v1394, %v1407
        %v1409 = vcombine.low %v1344, %v1360
        %v1410 = vcombine.high %v1344, %v1360
        %v1412 = vunpack.c.l.s4 1934713408
        %v1413 = vunpack.c.0.s8 %v1412
        %v1414 = vlaneseq
        %v1415 = vshrl.u32 %v1414, 7
        %v1416 = vsub.s32 %v1413, %v1415
        %v1417 = vrot.slane %v1409, %v1416
        %v1419 = vunpack.c.l.s4 1934713408
        %v1420 = vunpack.c.0.s8 %v1419
        %v1421 = vlaneseq
        %v1422 = vshrl.u32 %v1421, 7
        %v1423 = vsub.s32 %v1420, %v1422
        %v1424 = vrot.slane %v1410, %v1423
        %v1425 = vcombine.low %v1369, %v1385
        %v1426 = vcombine.high %v1369, %v1385
        %v1428 = vunpack.c.l.s4 1934713408
        %v1429 = vunpack.c.0.s8 %v1428
        %v1430 = vlaneseq
        %v1431 = vshrl.u32 %v1430, 7
        %v1432 = vsub.s32 %v1429, %v1431
        %v1433 = vrot.slane %v1425, %v1432
        %v1435 = vunpack.c.l.s4 1934713408
        %v1436 = vunpack.c.0.s8 %v1435
        %v1437 = vlaneseq
        %v1438 = vshrl.u32 %v1437, 7
        %v1439 = vsub.s32 %v1436, %v1438
        %v1440 = vrot.slane %v1426, %v1439
        %v1441 = vcombine.low %v1376, %v1392
        %v1442 = vcombine.high %v1376, %v1392
        %v1444 = vunpack.c.l.s4 1934713408
        %v1445 = vunpack.c.0.s8 %v1444
        %v1446 = vlaneseq
        %v1447 = vshrl.u32 %v1446, 7
        %v1448 = vsub.s32 %v1445, %v1447
        %v1449 = vrot.slane %v1441, %v1448
        %v1451 = vunpack.c.l.s4 1934713408
        %v1452 = vunpack.c.0.s8 %v1451
        %v1453 = vlaneseq
        %v1454 = vshrl.u32 %v1453, 7
        %v1455 = vsub.s32 %v1452, %v1454
        %v1456 = vrot.slane %v1442, %v1455
        %v1457 = vcombine.low %v1401, %v1433
        %v1458 = vcombine.high %v1401, %v1433
        %v1459 = vcombine.low %v1408, %v1440
        %v1460 = vcombine.high %v1408, %v1440
        %v1461 = vcombine.low %v1417, %v1449
        %v1462 = vcombine.high %v1417, %v1449
        %v1463 = vcombine.low %v1424, %v1456
        %v1464 = vcombine.high %v1424, %v1456
        %vm1465 = vcmask 31744
        %1466 = vst.msk [vmem:[%s136] sm:$0xff] %vm1465, %v1049
        %1467 = vst.msk [vmem:[%s136 + $0x8] sm:$0xff] %vm1465, %v1185
        %1468 = vst.msk [vmem:[%s136 + $0x10] sm:$0xff] %vm1465, %v1050
        %1469 = vst.msk [vmem:[%s136 + $0x18] sm:$0xff] %vm1465, %v1186
        %1470 = vst.msk [vmem:[%s136 + $0x20] sm:$0xff] %vm1465, %v1051
        %1471 = vst.msk [vmem:[%s136 + $0x28] sm:$0xff] %vm1465, %v1187
        %1472 = vst.msk [vmem:[%s136 + $0x30] sm:$0xff] %vm1465, %v1052
        %1473 = vst.msk [vmem:[%s136 + $0x38] sm:$0xff] %vm1465, %v1188
        %1474 = vst.msk [vmem:[%s136 + $0x40] sm:$0xff] %vm1465, %v1053
        %1475 = vst.msk [vmem:[%s136 + $0x48] sm:$0xff] %vm1465, %v1189
        %1476 = vst.msk [vmem:[%s136 + $0x50] sm:$0xff] %vm1465, %v1054
        %1477 = vst.msk [vmem:[%s136 + $0x58] sm:$0xff] %vm1465, %v1190
        %1478 = vst.msk [vmem:[%s136 + $0x60] sm:$0xff] %vm1465, %v1055
        %1479 = vst.msk [vmem:[%s136 + $0x68] sm:$0xff] %vm1465, %v1191
        %1480 = vst.msk [vmem:[%s136 + $0x70] sm:$0xff] %vm1465, %v1056
        %1481 = vst.msk [vmem:[%s136 + $0x78] sm:$0xff] %vm1465, %v1192
        %1482 = vst.msk [vmem:[%s136 + $0x80] sm:$0xff] %vm1465, %v1321
        %1483 = vst.msk [vmem:[%s136 + $0x88] sm:$0xff] %vm1465, %v1457
        %1484 = vst.msk [vmem:[%s136 + $0x90] sm:$0xff] %vm1465, %v1322
        %1485 = vst.msk [vmem:[%s136 + $0x98] sm:$0xff] %vm1465, %v1458
        %1486 = vst.msk [vmem:[%s136 + $0xa0] sm:$0xff] %vm1465, %v1323
        %1487 = vst.msk [vmem:[%s136 + $0xa8] sm:$0xff] %vm1465, %v1459
        %1488 = vst.msk [vmem:[%s136 + $0xb0] sm:$0xff] %vm1465, %v1324
        %1489 = vst.msk [vmem:[%s136 + $0xb8] sm:$0xff] %vm1465, %v1460
        %1490 = vst.msk [vmem:[%s136 + $0xc0] sm:$0xff] %vm1465, %v1325
        %1491 = vst.msk [vmem:[%s136 + $0xc8] sm:$0xff] %vm1465, %v1461
        %1492 = vst.msk [vmem:[%s136 + $0xd0] sm:$0xff] %vm1465, %v1326
        %1493 = vst.msk [vmem:[%s136 + $0xd8] sm:$0xff] %vm1465, %v1462
        %1494 = vst.msk [vmem:[%s136 + $0xe0] sm:$0xff] %vm1465, %v1327
        %1495 = vst.msk [vmem:[%s136 + $0xe8] sm:$0xff] %vm1465, %v1463
        %1496 = vst.msk [vmem:[%s136 + $0xf0] sm:$0xff] %vm1465, %v1328
        %1497 = vst.msk [vmem:[%s136 + $0xf8] sm:$0xff] %vm1465, %v1464
        %p1498 = scmp.lt.s32.totalorder %s15, 1
        %s1499 = scalar_select %p1498, %s15, 1
        %s1500 = smul.addr %s1499, 32
        %s1501 = smul.addr %s1500, 8
        %s1502 = scalar_lea.vmem %s1, %s1501
        // Predicated region
        $region29: #{tpu_custom_call.1} parent=23 // pred_check
          %p1503 = pneg %p59
        $region30: #{tpu_custom_call.1} parent=23 // pred_check_branch
          %1505 = sbr.rel (%p1503) target = $region32
        $region31: #{tpu_custom_call.1} parent=23 // pred_region
          _
        $region32: #{tpu_custom_call.1} parent=23 // pred_fallthru
          _
      $region24: #{tpu_custom_call.1} parent=5 // pred_fallthru
        _
      %p1506 = scmp.le.s32.totalorder 2, %s10
      // Predicated region
      $region33: #{tpu_custom_call.1} parent=5 // pred_check
        %p1507 = pneg %p1506
      $region34: #{tpu_custom_call.1} parent=5 // pred_check_branch
        %1509 = sbr.rel (%p1507) target = $region36
      $region35: #{tpu_custom_call.1} parent=5 // pred_region
        %s1510 = ssub.s32 %s10, 2
        // Predicated region
        $region37: #{tpu_custom_call.1} parent=35 // pred_check
          %p1511 = pneg %p65
        $region38: #{tpu_custom_call.1} parent=35 // pred_check_branch
          %1513 = sbr.rel (%p1511) target = $region40
        $region39: #{tpu_custom_call.1} parent=35 // pred_region
          %p1514 = scmp.lt.s32.totalorder %s16, 1
          %s1515 = scalar_select %p1514, %s16, 1
          %s1516 = smul.addr %s1515, 32
          %s1517 = smul.addr %s1516, 8
          %s1518 = scalar_lea.vmem %s1, %s1517
        $region40: #{tpu_custom_call.1} parent=35 // pred_fallthru
          _
      $region36: #{tpu_custom_call.1} parent=5 // pred_fallthru
        _
    $region6: #{tpu_custom_call.1} parent=1 // loop_footer
      %s14 = sadd.s32 1, %s10
    $region7: #{tpu_custom_call.1} parent=1 // loop_footer_branch
      %9 = sbr.rel target = $region3
    $region8: #{tpu_custom_call.1} parent=1 // loop_exit
      _
    %1519 = vsyncpa [#allocation3], 1
    %s1520 = scalar_lea.sflag [#allocation3], 1
    %1521 = vsyncpa %s1520, 1

</llo_original>
